<compile_context>
chip_gen: v6e
topology: v6e:2x2x1
jax: 0.10.0
libtpu: 0.0.40
codegen_flags: <defaults>
</compile_context>

<pallas_src>
import jax
import jax.numpy as jnp
from jax.experimental import pallas as pl
from jax.experimental.pallas import tpu as pltpu

VOC = [
    "background", "aeroplane", "bicycle", "bird", "boat", "bottle", "bus",
    "car", "cat", "chair", "cow", "diningtable", "dog", "horse", "motorbike",
    "person", "pottedplant", "sheep", "sofa", "train", "tvmonitor",
]
NUM_CLASSES = len(VOC)  # 21


def _clipseg_head_kernel(x_ref, p_ref, o_ref):
    # x_ref : [1, C, T]   one batch element, T-pixel lane tile (native dtype)
    # p_ref : [21, C+3]   per-class [0.5*w_0 .. 0.5*w_{C-1} | 0.5*b | 0.5*fac | 0.5*fac-10]
    # o_ref : [1, 21, T]
    C = x_ref.shape[1]
    x = x_ref[0].astype(jnp.float32)       # in-kernel cast (VPU, hidden under DMA)
    p = p_ref[...]                         # [21, C+3]
    half_b = p[:, C:C + 1]                 # 0.5 * bias        [21, 1]
    amp = p[:, C + 1:C + 2]                # 0.5 * fac         [21, 1]
    off = p[:, C + 2:C + 3]                # 0.5 * fac - 10    [21, 1]

    # Tiny (K=C) channel reduction as unrolled VPU broadcast-FMAs:
    #   s[k, t] = sum_c (0.5*w[k, c]) * x[c, t]
    # [21,1] lane-broadcast  *  [1,T] sublane-broadcast  ->  [21, T]
    s = p[:, 0:1] * x[0:1, :]
    for c in range(1, C):
        s = s + p[:, c:c + 1] * x[c:c + 1, :]

    # sigmoid(z)*fac - 10  ==  0.5*fac*tanh(0.5*z) + (0.5*fac - 10)
    # (EUP tanh + one FMA instead of exp/add/reciprocal/mul/sub).
    o_ref[0] = (amp * jnp.tanh(s + half_b) + off).astype(o_ref.dtype)


def _choose_tile(hw, batch, max_tile):
    """Pick a lane-tile (multiple of 128).

    Prefers an exact divisor of H*W only if it is large (>= max(4096, target/4));
    otherwise keeps the big tile and lets Pallas mask the ragged last block.
    Also splits the pixel axis so the grid has >= 2 steps (megacore / v7x 2-TC).
    """
    target = min(max_tile, hw)
    target = max(128, (target // 128) * 128)
    tile = target
    if hw % target != 0:
        floor = max(4096, target // 4)
        t = target
        while t >= floor:
            if hw % t == 0:
                tile = t
                break
            t -= 128
    # Load balance: make sure there is work for both TensorCores.
    if batch * pl.cdiv(hw, tile) < 2 and hw > 128:
        tile = max(128, (((hw + 1) // 2 + 127) // 128) * 128)
    return tile


def clipseg_multilabel(x, w, b, fac, *, max_tile=32768, out_dtype=jnp.float32):
    """x: [B, C, H, W] (NCHW, like the PyTorch module), any float dtype.
       w: [21, C], b: [21, 1], fac: [21, 1].
       Returns [B, 21, H, W] in `out_dtype` (use jnp.bfloat16 to halve writeback)."""
    B, C, H, W = x.shape
    hw = H * W
    tile = _choose_tile(hw, B, max_tile)
    num_tiles = pl.cdiv(hw, tile)

    # NCHW -> (B, C, H*W) is a free reshape; keep native dtype (no wrapper cast).
    x_flat = x.reshape(B, C, hw)

    # Fold 0.5*w, 0.5*bias, 0.5*fac and 0.5*fac-10 into one small resident block.
    half = jnp.float32(0.5)
    w32 = w.astype(jnp.float32)
    b32 = b.astype(jnp.float32)
    f32_ = fac.astype(jnp.float32)
    params = jnp.concatenate(
        [half * w32, half * b32, half * f32_, half * f32_ - 10.0], axis=1
    )  # [21, C+3]

    n_pix = B * hw
    cost = pl.CostEstimate(
        flops=(2 * C + 2) * NUM_CLASSES * n_pix,
        transcendentals=NUM_CLASSES * n_pix,
        bytes_accessed=int(
            C * n_pix * x.dtype.itemsize
            + NUM_CLASSES * n_pix * jnp.dtype(out_dtype).itemsize
            + params.size * 4
        ),
    )

    out = pl.pallas_call(
        _clipseg_head_kernel,
        out_shape=jax.ShapeDtypeStruct((B, NUM_CLASSES, hw), out_dtype),
        grid=(B, num_tiles),
        in_specs=[
            pl.BlockSpec((1, C, tile), lambda bi, ti: (bi, 0, ti)),
            pl.BlockSpec((NUM_CLASSES, C + 3), lambda bi, ti: (0, 0)),
        ],
        out_specs=pl.BlockSpec((1, NUM_CLASSES, tile),
                               lambda bi, ti: (bi, 0, ti)),
        compiler_params=pltpu.CompilerParams(
            dimension_semantics=("parallel", "parallel")),
        cost_estimate=cost,
    )(x_flat, params)

    # (B, 21, H*W) -> (B, 21, H, W) is a free reshape; no permute, no slice.
    return out.reshape(B, NUM_CLASSES, H, W)


def make_params(key, channels):
    kw, kb = jax.random.split(key)
    w = jax.random.normal(kw, (NUM_CLASSES, channels), jnp.float32) * 0.5
    b = jax.random.normal(kb, (NUM_CLASSES, 1), jnp.float32) * 0.1
    fac = jnp.array([[3.0 if name == "background" else 1.0] for name in VOC],
                    dtype=jnp.float32)  # [21, 1]
    return w, b, fac


def _reference(x, w, b, fac):
    scores = jnp.einsum("kc,bchw->bkhw", w, x) + b[None, :, :, None]
    return jax.nn.sigmoid(scores) * fac[None, :, :, None] - 10.0


if __name__ == "__main__":
    key = jax.random.PRNGKey(0)
    kx, kp, kx2 = jax.random.split(key, 3)

    # Small shapes consistent with the forward pass (NCHW RGB image batch).
    B, C, H, W = 2, 3, 16, 16
    x = jax.random.normal(kx, (B, C, H, W), jnp.float32)
    w, b, fac = make_params(kp, C)

    out = jax.block_until_ready(clipseg_multilabel(x, w, b, fac))
    assert out.shape == (B, NUM_CLASSES, H, W), out.shape
    ref = _reference(x, w, b, fac)
    assert jnp.allclose(out, ref, atol=1e-4, rtol=1e-4), \
        float(jnp.max(jnp.abs(out - ref)))

    # Odd spatial size (18*18 = 324 pixels) exercises the ragged last-tile path
    # (no wrapper pad, no post-kernel slice).
    H2 = W2 = 18
    x2 = jax.random.normal(kx2, (B, C, H2, W2), jnp.float32)
    out2 = jax.block_until_ready(clipseg_multilabel(x2, w, b, fac))
    ref2 = _reference(x2, w, b, fac)
    assert out2.shape == (B, NUM_CLASSES, H2, W2), out2.shape
    assert jnp.allclose(out2, ref2, atol=1e-4, rtol=1e-4), \
        float(jnp.max(jnp.abs(out2 - ref2)))

    # bf16 input + bf16 output fast path (in-kernel cast, half writeback bytes).
    x3 = x2.astype(jnp.bfloat16)
    out3 = jax.block_until_ready(
        clipseg_multilabel(x3, w, b, fac, out_dtype=jnp.bfloat16))
    assert out3.shape == (B, NUM_CLASSES, H2, W2), out3.shape
    ref3 = _reference(x3.astype(jnp.float32), w, b, fac)
    assert jnp.allclose(out3.astype(jnp.float32), ref3, atol=0.1, rtol=0.02), \
        float(jnp.max(jnp.abs(out3.astype(jnp.float32) - ref3)))

    print("KERNEL_OK")
</pallas_src>

<mosaic_0001>
module attributes {stable_mosaic.version = 11 : i64} {
  func.func @_clipseg_head_kernel(%arg0: i32, %arg1: i32, %arg2: memref<1x3x256xf32, #tpu.memory_space<vmem>>, %arg3: memref<21x6xf32, #tpu.memory_space<vmem>>, %arg4: memref<1x21x256xf32, #tpu.memory_space<vmem>>) attributes {dimension_semantics = [#tpu.dimension_semantics<parallel>, #tpu.dimension_semantics<parallel>], iteration_bounds = array<i64: 2, 1>, scalar_prefetch = 0 : i64, scratch_operands = 0 : i64, tpu.core_type = #tpu.core_type<tc>, window_params = [{transform_indices = @transform_0, window_bounds = array<i64: 1, 3, 256>}, {pipeline_mode = #tpu.pipeline_mode<synchronous>, transform_indices = @transform_1, window_bounds = array<i64: 21, 6>}, {transform_indices = @transform_2, window_bounds = array<i64: 1, 21, 256>}]} {
    %c0 = arith.constant 0 : index
    %c0_0 = arith.constant 0 : index
    %c0_1 = arith.constant 0 : index
    %0 = vector.load %arg2[%c0, %c0_0, %c0_1] : memref<1x3x256xf32, #tpu.memory_space<vmem>>, vector<1x3x256xf32>
    %1 = vector.shape_cast %0 : vector<1x3x256xf32> to vector<3x256xf32>
    %c0_2 = arith.constant 0 : index
    %c0_3 = arith.constant 0 : index
    %2 = vector.load %arg3[%c0_2, %c0_3] : memref<21x6xf32, #tpu.memory_space<vmem>>, vector<21x6xf32>
    %3 = vector.extract_strided_slice %2 {offsets = [0, 3], sizes = [21, 1], strides = [1, 1]} : vector<21x6xf32> to vector<21x1xf32>
    %4 = vector.extract_strided_slice %2 {offsets = [0, 4], sizes = [21, 1], strides = [1, 1]} : vector<21x6xf32> to vector<21x1xf32>
    %5 = vector.extract_strided_slice %2 {offsets = [0, 5], sizes = [21, 1], strides = [1, 1]} : vector<21x6xf32> to vector<21x1xf32>
    %6 = vector.extract_strided_slice %2 {offsets = [0, 0], sizes = [21, 1], strides = [1, 1]} : vector<21x6xf32> to vector<21x1xf32>
    %7 = vector.extract_strided_slice %1 {offsets = [0, 0], sizes = [1, 256], strides = [1, 1]} : vector<3x256xf32> to vector<1x256xf32>
    %8 = vector.broadcast %6 : vector<21x1xf32> to vector<21x256xf32>
    %9 = vector.broadcast %7 : vector<1x256xf32> to vector<21x256xf32>
    %10 = arith.mulf %8, %9 : vector<21x256xf32>
    %11 = vector.extract_strided_slice %2 {offsets = [0, 1], sizes = [21, 1], strides = [1, 1]} : vector<21x6xf32> to vector<21x1xf32>
    %12 = vector.extract_strided_slice %1 {offsets = [1, 0], sizes = [1, 256], strides = [1, 1]} : vector<3x256xf32> to vector<1x256xf32>
    %13 = vector.broadcast %11 : vector<21x1xf32> to vector<21x256xf32>
    %14 = vector.broadcast %12 : vector<1x256xf32> to vector<21x256xf32>
    %15 = arith.mulf %13, %14 : vector<21x256xf32>
    %16 = arith.addf %10, %15 : vector<21x256xf32>
    %17 = vector.extract_strided_slice %2 {offsets = [0, 2], sizes = [21, 1], strides = [1, 1]} : vector<21x6xf32> to vector<21x1xf32>
    %18 = vector.extract_strided_slice %1 {offsets = [2, 0], sizes = [1, 256], strides = [1, 1]} : vector<3x256xf32> to vector<1x256xf32>
    %19 = vector.broadcast %17 : vector<21x1xf32> to vector<21x256xf32>
    %20 = vector.broadcast %18 : vector<1x256xf32> to vector<21x256xf32>
    %21 = arith.mulf %19, %20 : vector<21x256xf32>
    %22 = arith.addf %16, %21 : vector<21x256xf32>
    %23 = vector.broadcast %3 : vector<21x1xf32> to vector<21x256xf32>
    %24 = arith.addf %22, %23 : vector<21x256xf32>
    %25 = math.tanh %24 : vector<21x256xf32>
    %26 = vector.broadcast %4 : vector<21x1xf32> to vector<21x256xf32>
    %27 = arith.mulf %26, %25 : vector<21x256xf32>
    %28 = vector.broadcast %5 : vector<21x1xf32> to vector<21x256xf32>
    %29 = arith.addf %27, %28 : vector<21x256xf32>
    %c0_4 = arith.constant 0 : index
    %c0_5 = arith.constant 0 : index
    %c0_6 = arith.constant 0 : index
    %30 = vector.load %arg4[%c0_4, %c0_5, %c0_6] : memref<1x21x256xf32, #tpu.memory_space<vmem>>, vector<1x21x256xf32>
    %31 = vector.shape_cast %30 : vector<1x21x256xf32> to vector<21x256xf32>
    %32 = vector.shape_cast %29 : vector<21x256xf32> to vector<1x21x256xf32>
    tpu.vector_store %arg4[%c0_4, %c0_5, %c0_6], %32 {strides = array<i32>} : memref<1x21x256xf32, #tpu.memory_space<vmem>>, vector<1x21x256xf32>,
    return
  }
  func.func @transform_0(%arg0: i32, %arg1: i32) -> (i32, i32, i32) {
    %c0_i32 = arith.constant 0 : i32
    %c0_i32_0 = arith.constant 0 : i32
    return %arg0, %c0_i32, %arg1 : i32, i32, i32
  }
  func.func @transform_1(%arg0: i32, %arg1: i32) -> (i32, i32) {
    %c0_i32 = arith.constant 0 : i32
    %c0_i32_0 = arith.constant 0 : i32
    %c0_i32_1 = arith.constant 0 : i32
    return %c0_i32, %c0_i32_0 : i32, i32
  }
  func.func @transform_2(%arg0: i32, %arg1: i32) -> (i32, i32, i32) {
    %c0_i32 = arith.constant 0 : i32
    %c0_i32_0 = arith.constant 0 : i32
    return %arg0, %c0_i32, %arg1 : i32, i32, i32
  }
}

</mosaic_0001>

<llo_original>
// kernel: tpu_custom_call.1
$region0: #{tpu_custom_call.1}
  #allocation0 [shape = 'u32[]', space=smem, size = 0x4, offset = 0x4, fixed_abs, tag = 'smem constant byte address 0x4 - core index']
  #allocation1 [shape = 'u32[144,128]{1,0:T(1,128)}', space=vmem, size = 0x12000, scoped, tag = 'internal scratch']
  %s0 = inlined_call_operand.vmem [shape: f32[2,3,256], index: 0, kind: input, shape index: {}]
  %s1 = inlined_call_operand.vmem [shape: f32[21,6], index: 1, kind: input, shape index: {}]
  %s2 = inlined_call_operand.vmem [shape: f32[2,21,256], index: 2, kind: output, shape index: {}]
  %s3 = sld [smem:[#allocation0]]
  $region41: #{tpu_custom_call.1} parent=0
    _
  %s5 = ssub.s32 1, %s3
  %s6 = scalar_select 0, %s5, %s3
  loop: start=0, step=1, limit=4
  $region2: #{tpu_custom_call.1} parent=0 // loop_pre_header
    _
  $region3: #{tpu_custom_call.1} parent=0 // loop_header
    %s8 = sphi 0, %s12
    %p9 = scmp.ge.s32.totalorder %s8, 4
    %s15 = sphi 0, %s27
    %s16 = sphi 0, %s23
    %s17 = sphi 0, %s15
    %s18 = sphi 0, %s16
    %s19 = sphi 0, %s17
    %s20 = sphi 0, %s18
    %s32 = sphi 0, %s34
    %s35 = sphi 0, %s32
    %s36 = sphi 0, %s35
    %s52 = sphi 0, %s36
    %s56 = sphi 0, %s56
    %s58 = sphi 0, %s56
    %s59 = sphi 0, %s58
    %s73 = sphi 0, %s59
    %s81 = sphi 0, %s83
    %s84 = sphi 0, %s81
    %s85 = sphi 0, %s84
    %s101 = sphi 0, %s85
  $region4: #{tpu_custom_call.1} parent=0 // loop_header_branch
    %11 = sbr.rel (%p9) target = $region8
  $region5: #{tpu_custom_call.1} parent=0 // loop_body
    %s13 = ssub.s32 %s8, 1
    %s14 = ssub.s32 %s8, 2
    %s21 = sadd.s32 1, %s16
    %p22 = scmp.ge.s32.totalorder %s21, 1
    %s23 = scalar_select %p22, 0, %s21
    %s24 = sadd.s32 1, %s15
    %s25 = scalar_select %p22, %s24, %s15
    %p26 = scmp.ge.s32.totalorder %s25, 2
    %s27 = scalar_select %p26, 0, %s25
    %s28 = ssub.s32 %s15, %s27
    %s29 = ssub.s32 %s16, %s23
    %s30 = sor.u32 %s28, %s29
    %p31 = scmp.eq.s32.totalorder %s30, 0
    %s33 = sadd.s32 %s32, 1
    %s34 = scalar_select %p31, %s32, %s33
    %p37 = pneg %p31
    %p38 = scmp.eq.s32.totalorder %s8, 1
    %p39 = por %p37, %p38
    %p40 = scmp.ne.s32.totalorder %s32, %s35
    %p41 = scmp.eq.s32.totalorder %s8, 0
    %p42 = por %p40, %p41
    %p43 = scmp.ne.s32.totalorder %s32, %s35
    %p44 = scmp.eq.s32.totalorder %s13, 1
    %p45 = por %p43, %p44
    %p46 = scmp.ne.s32.totalorder %s35, %s36
    %p47 = scmp.eq.s32.totalorder %s13, 0
    %p48 = por %p46, %p47
    %p49 = scmp.ne.s32.totalorder %s35, %s36
    %p50 = scmp.eq.s32.totalorder %s14, 1
    %p51 = por %p49, %p50
    %p53 = scmp.ne.s32.totalorder %s36, %s52
    %p54 = scmp.eq.s32.totalorder %s14, 0
    %p55 = por %p53, %p54
    %s57 = sadd.s32 %s56, 1
    %p60 = scmp.eq.s32.totalorder %s8, 1
    %p61 = scmp.ne.s32.totalorder %s56, %s58
    %p62 = scmp.eq.s32.totalorder %s8, 0
    %p63 = por %p61, %p62
    %p64 = scmp.ne.s32.totalorder %s56, %s58
    %p65 = scmp.eq.s32.totalorder %s13, 1
    %p66 = por %p64, %p65
    %p67 = scmp.ne.s32.totalorder %s58, %s59
    %p68 = scmp.eq.s32.totalorder %s13, 0
    %p69 = por %p67, %p68
    %p70 = scmp.ne.s32.totalorder %s58, %s59
    %p71 = scmp.eq.s32.totalorder %s14, 1
    %p72 = por %p70, %p71
    %p74 = scmp.ne.s32.totalorder %s59, %s73
    %p75 = scmp.eq.s32.totalorder %s14, 0
    %p76 = por %p74, %p75
    %s77 = ssub.s32 %s15, %s27
    %s78 = ssub.s32 %s16, %s23
    %s79 = sor.u32 %s77, %s78
    %p80 = scmp.eq.s32.totalorder %s79, 0
    %s82 = sadd.s32 %s81, 1
    %s83 = scalar_select %p80, %s81, %s82
    %p86 = pneg %p80
    %p87 = scmp.eq.s32.totalorder %s8, 1
    %p88 = por %p86, %p87
    %p89 = scmp.ne.s32.totalorder %s81, %s84
    %p90 = scmp.eq.s32.totalorder %s8, 0
    %p91 = por %p89, %p90
    %p92 = scmp.ne.s32.totalorder %s81, %s84
    %p93 = scmp.eq.s32.totalorder %s13, 1
    %p94 = por %p92, %p93
    %p95 = scmp.ne.s32.totalorder %s84, %s85
    %p96 = scmp.eq.s32.totalorder %s13, 0
    %p97 = por %p95, %p96
    %p98 = scmp.ne.s32.totalorder %s84, %s85
    %p99 = scmp.eq.s32.totalorder %s14, 1
    %p100 = por %p98, %p99
    %p102 = scmp.ne.s32.totalorder %s85, %s101
    %p103 = scmp.eq.s32.totalorder %s14, 0
    %p104 = por %p102, %p103
    %p105 = scmp.le.s32.totalorder 1, %s8
    %p106 = scmp.lt.s32.totalorder %s8, 3
    %p107 = pnand %p105, %p106
    %p108 = pneg %p107
    // Predicated region
    $region9: #{tpu_custom_call.1} parent=5 // pred_check
      _
    $region10: #{tpu_custom_call.1} parent=5 // pred_check_branch
      %110 = sbr.rel (%p107) target = $region12
    $region11: #{tpu_custom_call.1} parent=5 // pred_region
      %s111 = ssub.s32 %s8, 1
      // Predicated region
      $region13: #{tpu_custom_call.1} parent=11 // pred_check
        %p112 = pneg %p69
      $region14: #{tpu_custom_call.1} parent=11 // pred_check_branch
        %114 = sbr.rel (%p112) target = $region16
      $region15: #{tpu_custom_call.1} parent=11 // pred_region
        _
      $region16: #{tpu_custom_call.1} parent=11 // pred_fallthru
        _
    $region12: #{tpu_custom_call.1} parent=5 // pred_fallthru
      _
    %p115 = scmp.lt.s32.totalorder %s8, 2
    // Predicated region
    $region17: #{tpu_custom_call.1} parent=5 // pred_check
      %p116 = pneg %p115
    $region18: #{tpu_custom_call.1} parent=5 // pred_check_branch
      %118 = sbr.rel (%p116) target = $region20
    $region19: #{tpu_custom_call.1} parent=5 // pred_region
      // Predicated region
      $region21: #{tpu_custom_call.1} parent=19 // pred_check
        %p119 = pneg %p42
      $region22: #{tpu_custom_call.1} parent=19 // pred_check_branch
        %121 = sbr.rel (%p119) target = $region24
      $region23: #{tpu_custom_call.1} parent=19 // pred_region
        %s122 = smul.u32 2, %s16
        %p123 = scmp.lt.s32.totalorder %s15, 1
        %s124 = scalar_select %p123, %s15, 1
        %p125 = scmp.lt.s32.totalorder %s122, 1
        %s126 = scalar_select %p125, %s122, 1
        %s127 = smul.addr %s124, 2
        %s128 = sadd.s32 %s126, %s127
        %s129 = smul.addr %s128, 4
        %s130 = scalar_lea.vmem %s0, %s129
        %s131 = smul.u32 2, %s16
      $region24: #{tpu_custom_call.1} parent=19 // pred_fallthru
        _
    $region20: #{tpu_custom_call.1} parent=5 // pred_fallthru
      _
    %p132 = scmp.le.s32.totalorder 1, %s8
    %p133 = scmp.lt.s32.totalorder %s8, 3
    %p134 = pnand %p132, %p133
    %p135 = pneg %p134
    // Predicated region
    $region25: #{tpu_custom_call.1} parent=5 // pred_check
      _
    $region26: #{tpu_custom_call.1} parent=5 // pred_check_branch
      %137 = sbr.rel (%p134) target = $region28
    $region27: #{tpu_custom_call.1} parent=5 // pred_region
      %s138 = ssub.s32 %s8, 1
      %s139 = smul.u32 2, %s18
      %p140 = scmp.lt.s32.totalorder %s17, 1
      %s141 = scalar_select %p140, %s17, 1
      %p142 = scmp.lt.s32.totalorder %s139, 1
      %s143 = scalar_select %p142, %s139, 1
      %s144 = smul.addr %s141, 2
      %s145 = sadd.s32 %s143, %s144
      %s146 = smul.addr %s145, 4
      %s147 = scalar_lea.vmem %s0, %s146
      %p148 = pneg %p48
      %p149 = pneg %p45
      %p150 = pneg %p69
      %p151 = pneg %p66
      %p152 = pneg %p97
      %p153 = pneg %p94
      %s154 = smul.u32 2, %s18
      %p155 = scmp.lt.s32.totalorder %s17, 1
      %s156 = scalar_select %p155, %s17, 1
      %p157 = scmp.lt.s32.totalorder %s154, 1
      %s158 = scalar_select %p157, %s154, 1
      %s159 = smul.addr %s156, 6
      %s160 = sadd.s32 %s158, %s159
      %s161 = smul.addr %s160, 8
      %s162 = scalar_lea.vmem %s2, %s161
      %s163 = smul.u32 2, %s18
      %p164 = scmp.lt.s32.totalorder %s17, 1
      %s165 = scalar_select %p164, %s17, 1
      %p166 = scmp.lt.s32.totalorder %s163, 1
      %s167 = scalar_select %p166, %s163, 1
      %s168 = smul.addr %s165, 2
      %s169 = sadd.s32 %s167, %s168
      %s170 = smul.addr %s169, 4
      %s171 = scalar_lea.vmem %s0, %s170
      %s172 = smul.u32 2, %s18
      %s173 = smul.u32 2, %s18
      %p174 = scmp.lt.s32.totalorder %s17, 1
      %s175 = scalar_select %p174, %s17, 1
      %p176 = scmp.lt.s32.totalorder %s173, 1
      %s177 = scalar_select %p176, %s173, 1
      %s178 = smul.addr %s175, 6
      %s179 = sadd.s32 %s177, %s178
      %s180 = smul.addr %s179, 8
      %s181 = scalar_lea.vmem %s2, %s180
      %s182 = smul.u32 2, %s18
      %v183 = vld [vmem:[%s171] sm:$0x77]
      %v184 = vld [vmem:[%s1] sm:$0xff]
      %v185 = vld [vmem:[%s1 + $0x8] sm:$0xff]
      %v186 = vld [vmem:[%s1 + $0x10] sm:$0x1f]
      %188 = vset.pattern.permute.xlu0 0
      %189 = vperm.xlu0 %188, %v184
      %v190 = vpop.permute.xlu0 %189
      %193 = vset.pattern.permute.xlu0 0
      %194 = vperm.xlu0 %193, %v185
      %v195 = vpop.permute.xlu0 %194
      %198 = vset.pattern.permute.xlu0 0
      %199 = vperm.xlu0 %198, %v186
      %v200 = vpop.permute.xlu0 %199
      %v203 = vlaneseq
      %v204 = vshrl.u32 %v203, 7
      %v205 = vsub.s32 0, %v204
      %v206 = vrot.slane %v183, %v205
      %v207 = vlaneseq
      %v208 = vshrl.u32 %v207, 7
      %v209 = vsub.s32 4, %v208
      %v210 = vrot.slane %v183, %v209
      %v213 = vlaneseq
      %v214 = vshrl.u32 %v213, 7
      %v215 = vsub.s32 0, %v214
      %v216 = vrot.slane %v206, %v215
      %v217 = vlaneseq
      %v218 = vshrl.u32 %v217, 7
      %v219 = vsub.s32 0, %v218
      %v220 = vrot.slane %v210, %v219
      %v221 = vmul.f32 %v190, %v216
      %v222 = vmul.f32 %v190, %v220
      %v223 = vmul.f32 %v195, %v216
      %v224 = vmul.f32 %v195, %v220
      %v225 = vmul.f32 %v200, %v216
      %v226 = vmul.f32 %v200, %v220
      %227 = vset.pattern.permute.xlu0 1
      %228 = vperm.xlu0 %227, %v184
      %v229 = vpop.permute.xlu0 %228
      %231 = vset.pattern.permute.xlu0 1
      %232 = vperm.xlu0 %231, %v185
      %v233 = vpop.permute.xlu0 %232
      %235 = vset.pattern.permute.xlu0 1
      %236 = vperm.xlu0 %235, %v186
      %v237 = vpop.permute.xlu0 %236
      %v239 = vlaneseq
      %v240 = vshrl.u32 %v239, 7
      %v241 = vsub.s32 1, %v240
      %v242 = vrot.slane %v183, %v241
      %v243 = vlaneseq
      %v244 = vshrl.u32 %v243, 7
      %v245 = vsub.s32 5, %v244
      %v246 = vrot.slane %v183, %v245
      %v249 = vlaneseq
      %v250 = vshrl.u32 %v249, 7
      %v251 = vsub.s32 1, %v250
      %v252 = vrot.slane %v242, %v251
      %v253 = vlaneseq
      %v254 = vshrl.u32 %v253, 7
      %v255 = vsub.s32 1, %v254
      %v256 = vrot.slane %v246, %v255
      %v257 = vmul.f32 %v229, %v252
      %v258 = vmul.f32 %v229, %v256
      %v259 = vmul.f32 %v233, %v252
      %v260 = vmul.f32 %v233, %v256
      %v261 = vmul.f32 %v237, %v252
      %v262 = vmul.f32 %v237, %v256
      %v263 = vadd.f32 %v221, %v257
      %v264 = vadd.f32 %v222, %v258
      %v265 = vadd.f32 %v223, %v259
      %v266 = vadd.f32 %v224, %v260
      %v267 = vadd.f32 %v225, %v261
      %v268 = vadd.f32 %v226, %v262
      %269 = vset.pattern.permute.xlu0 2
      %270 = vperm.xlu0 %269, %v184
      %v271 = vpop.permute.xlu0 %270
      %273 = vset.pattern.permute.xlu0 2
      %274 = vperm.xlu0 %273, %v185
      %v275 = vpop.permute.xlu0 %274
      %277 = vset.pattern.permute.xlu0 2
      %278 = vperm.xlu0 %277, %v186
      %v279 = vpop.permute.xlu0 %278
      %v281 = vlaneseq
      %v282 = vshrl.u32 %v281, 7
      %v283 = vsub.s32 2, %v282
      %v284 = vrot.slane %v183, %v283
      %v285 = vlaneseq
      %v286 = vshrl.u32 %v285, 7
      %v287 = vsub.s32 6, %v286
      %v288 = vrot.slane %v183, %v287
      %v291 = vlaneseq
      %v292 = vshrl.u32 %v291, 7
      %v293 = vsub.s32 2, %v292
      %v294 = vrot.slane %v284, %v293
      %v295 = vlaneseq
      %v296 = vshrl.u32 %v295, 7
      %v297 = vsub.s32 2, %v296
      %v298 = vrot.slane %v288, %v297
      %v299 = vmul.f32 %v271, %v294
      %v300 = vmul.f32 %v271, %v298
      %v301 = vmul.f32 %v275, %v294
      %v302 = vmul.f32 %v275, %v298
      %v303 = vmul.f32 %v279, %v294
      %v304 = vmul.f32 %v279, %v298
      %v305 = vadd.f32 %v263, %v299
      %v306 = vadd.f32 %v264, %v300
      %v307 = vadd.f32 %v265, %v301
      %v308 = vadd.f32 %v266, %v302
      %v309 = vadd.f32 %v267, %v303
      %v310 = vadd.f32 %v268, %v304
      %311 = vset.pattern.permute.xlu0 3
      %312 = vperm.xlu0 %311, %v184
      %v313 = vpop.permute.xlu0 %312
      %315 = vset.pattern.permute.xlu0 3
      %316 = vperm.xlu0 %315, %v185
      %v317 = vpop.permute.xlu0 %316
      %319 = vset.pattern.permute.xlu0 3
      %320 = vperm.xlu0 %319, %v186
      %v321 = vpop.permute.xlu0 %320
      %v323 = vadd.f32 %v305, %v313
      %v324 = vadd.f32 %v306, %v313
      %v325 = vadd.f32 %v307, %v317
      %v326 = vadd.f32 %v308, %v317
      %v327 = vadd.f32 %v309, %v321
      %v328 = vadd.f32 %v310, %v321
      %v329 = vtanh.pop %v323
      %v330 = vtanh.pop %v324
      %v331 = vtanh.pop %v325
      %v332 = vtanh.pop %v326
      %v333 = vtanh.pop %v327
      %v334 = vtanh.pop %v328
      %335 = vset.pattern.permute.xlu0 4
      %336 = vperm.xlu0 %335, %v184
      %v337 = vpop.permute.xlu0 %336
      %339 = vset.pattern.permute.xlu0 4
      %340 = vperm.xlu0 %339, %v185
      %v341 = vpop.permute.xlu0 %340
      %343 = vset.pattern.permute.xlu0 4
      %344 = vperm.xlu0 %343, %v186
      %v345 = vpop.permute.xlu0 %344
      %v347 = vmul.f32 %v337, %v329
      %v348 = vmul.f32 %v337, %v330
      %v349 = vmul.f32 %v341, %v331
      %v350 = vmul.f32 %v341, %v332
      %v351 = vmul.f32 %v345, %v333
      %v352 = vmul.f32 %v345, %v334
      %353 = vset.pattern.permute.xlu0 5
      %354 = vperm.xlu0 %353, %v184
      %v355 = vpop.permute.xlu0 %354
      %357 = vset.pattern.permute.xlu0 5
      %358 = vperm.xlu0 %357, %v185
      %v359 = vpop.permute.xlu0 %358
      %361 = vset.pattern.permute.xlu0 5
      %362 = vperm.xlu0 %361, %v186
      %v363 = vpop.permute.xlu0 %362
      %v365 = vadd.f32 %v347, %v355
      %v366 = vadd.f32 %v348, %v355
      %v367 = vadd.f32 %v349, %v359
      %v368 = vadd.f32 %v350, %v359
      %v369 = vadd.f32 %v351, %v363
      %v370 = vadd.f32 %v352, %v363
      %371 = vst [vmem:[%s181] sm:$0xff] %v365
      %372 = vst [vmem:[%s181 + $0x8] sm:$0xff] %v366
      %373 = vst [vmem:[%s181 + $0x10] sm:$0xff] %v367
      %374 = vst [vmem:[%s181 + $0x18] sm:$0xff] %v368
      %375 = vst [vmem:[%s181 + $0x20] sm:$0x1f] %v369
      %376 = vst [vmem:[%s181 + $0x28] sm:$0x1f] %v370
      %s377 = smul.u32 2, %s18
      %p378 = scmp.lt.s32.totalorder %s17, 1
      %s379 = scalar_select %p378, %s17, 1
      %p380 = scmp.lt.s32.totalorder %s377, 1
      %s381 = scalar_select %p380, %s377, 1
      %s382 = smul.addr %s379, 6
      %s383 = sadd.s32 %s381, %s382
      %s384 = smul.addr %s383, 8
      %s385 = scalar_lea.vmem %s2, %s384
      // Predicated region
      $region29: #{tpu_custom_call.1} parent=27 // pred_check
        %p386 = pneg %p94
      $region30: #{tpu_custom_call.1} parent=27 // pred_check_branch
        %388 = sbr.rel (%p386) target = $region32
      $region31: #{tpu_custom_call.1} parent=27 // pred_region
        %s389 = smul.u32 2, %s18
      $region32: #{tpu_custom_call.1} parent=27 // pred_fallthru
        _
    $region28: #{tpu_custom_call.1} parent=5 // pred_fallthru
      _
    %p390 = scmp.le.s32.totalorder 2, %s8
    // Predicated region
    $region33: #{tpu_custom_call.1} parent=5 // pred_check
      %p391 = pneg %p390
    $region34: #{tpu_custom_call.1} parent=5 // pred_check_branch
      %393 = sbr.rel (%p391) target = $region36
    $region35: #{tpu_custom_call.1} parent=5 // pred_region
      %s394 = ssub.s32 %s8, 2
      // Predicated region
      $region37: #{tpu_custom_call.1} parent=35 // pred_check
        %p395 = pneg %p100
      $region38: #{tpu_custom_call.1} parent=35 // pred_check_branch
        %397 = sbr.rel (%p395) target = $region40
      $region39: #{tpu_custom_call.1} parent=35 // pred_region
        %s398 = smul.u32 2, %s20
        %p399 = scmp.lt.s32.totalorder %s19, 1
        %s400 = scalar_select %p399, %s19, 1
        %p401 = scmp.lt.s32.totalorder %s398, 1
        %s402 = scalar_select %p401, %s398, 1
        %s403 = smul.addr %s400, 6
        %s404 = sadd.s32 %s402, %s403
        %s405 = smul.addr %s404, 8
        %s406 = scalar_lea.vmem %s2, %s405
      $region40: #{tpu_custom_call.1} parent=35 // pred_fallthru
        _
    $region36: #{tpu_custom_call.1} parent=5 // pred_fallthru
      _
  $region6: #{tpu_custom_call.1} parent=0 // loop_footer
    %s12 = sadd.s32 1, %s8
  $region7: #{tpu_custom_call.1} parent=0 // loop_footer_branch
    %7 = sbr.rel target = $region3
  $region8: #{tpu_custom_call.1} parent=0 // loop_exit
    _

</llo_original>
